<compile_context>
chip_gen: v7x
topology: tpu7x:2x2x1
jax: 0.10.0
libtpu: 0.0.40
codegen_flags: <defaults>
</compile_context>

<pallas_src>
import functools

import jax
import jax.numpy as jnp
from jax.experimental import pallas as pl
from jax.experimental.pallas import tpu as pltpu

LANE = 128                              # vreg lane width
MAX_TB = 4096                           # hard cap on the batch tile
VMEM_LIMIT_BYTES = 32 * 1024 * 1024     # <= physical VMEM on v5e/v6e (128 MiB) and v7x (64 MiB)
VMEM_TILE_BUDGET = 24 * 1024 * 1024     # tile budget inside that limit (margin for temporaries)


def _round_up(x: int, m: int) -> int:
    return ((x + m - 1) // m) * m


def _round_down(x: int, m: int) -> int:
    return (x // m) * m


def _min_sublane(dtype) -> int:
    # Minimum second-to-last tile dim: 8 (f32), 16 (bf16), 32 (int8/fp8).
    return max(8, 32 // jnp.dtype(dtype).itemsize)


def actor_forward_kernel(x_ref, w1_ref, b1_ref, w2_ref, b2_ref, w3_ref, b3_ref, o_ref):
    # fc1 + ReLU  (MXU matmul, f32 accumulate; bias/activation in f32 on the VPU)
    h1 = jnp.dot(x_ref[...], w1_ref[...], preferred_element_type=jnp.float32)
    h1 = jnp.maximum(h1 + b1_ref[...], 0.0).astype(w2_ref.dtype)  # no-op cast in f32 path
    # fc2 + ReLU
    h2 = jnp.dot(h1, w2_ref[...], preferred_element_type=jnp.float32)
    h2 = jnp.maximum(h2 + b2_ref[...], 0.0).astype(w3_ref.dtype)
    # mu head + tanh (narrow N = n_actions; tanh runs on the EUP, off the critical path)
    mu = jnp.dot(h2, w3_ref[...], preferred_element_type=jnp.float32)
    o_ref[...] = jnp.tanh(mu + b3_ref[...]).astype(o_ref.dtype)


def init_linear(key, fan_in, fan_out):
    # Mimic torch nn.Linear default init: U(-1/sqrt(fan_in), 1/sqrt(fan_in)).
    # Weight stored as [in, out] (transpose of torch's [out, in]); bias as [1, out].
    kw, kb = jax.random.split(key)
    bound = 1.0 / jnp.sqrt(jnp.float32(fan_in))
    w = jax.random.uniform(kw, (fan_in, fan_out), jnp.float32, -bound, bound)
    b = jax.random.uniform(kb, (1, fan_out), jnp.float32, -bound, bound)
    return w, b


def pad_actor_params(w1, b1, w2, b2, w3, b3, *, param_dtype=jnp.float32):
    """One-time lane padding of the parameters (call once, outside the hot path).

    Hidden feature widths are zero-padded to multiples of 128 so the two big matmuls
    are lane-dense; the mu head keeps its true n_actions width (output block spans
    the full last dim, so no padded writeback).  Zero padding is exact: padded hidden
    units have zero weights and zero bias, and relu(0)=0 contributes nothing downstream.
    Weights may be cast to bf16 (recommended for large batched calls on v6e/v7x);
    biases stay f32 (added to the f32 MXU accumulator)."""
    d_in, f1 = w1.shape
    f2 = w2.shape[1]
    f1p, f2p = _round_up(f1, LANE), _round_up(f2, LANE)

    def pad2(a, rows, cols):
        return jnp.pad(a, ((0, rows - a.shape[0]), (0, cols - a.shape[1])))

    w1p = pad2(w1, d_in, f1p).astype(param_dtype)
    w2p = pad2(w2, f1p, f2p).astype(param_dtype)
    w3p = pad2(w3, f2p, w3.shape[1]).astype(param_dtype)   # N axis left unpadded
    b1p = pad2(b1, 1, f1p).astype(jnp.float32)
    b2p = pad2(b2, 1, f2p).astype(jnp.float32)
    b3p = b3.astype(jnp.float32)                           # (1, n_actions), unpadded
    return w1p, b1p, w2p, b2p, w3p, b3p


@functools.partial(jax.jit, static_argnames=("block_b",))
def actor_forward(state, w1, b1, w2, b2, w3, b3, *, block_b=2048):
    """state: [B, D_in]; params from pad_actor_params.  Returns [B, n_actions] f32."""
    B, d_in = state.shape
    f1p = w1.shape[1]
    f2p = w2.shape[1]
    na = w3.shape[1]

    sub = _min_sublane(state.dtype)
    s_bytes = jnp.dtype(state.dtype).itemsize
    w_bytes = jnp.dtype(w1.dtype).itemsize

    # ---- VMEM-aware batch-tile sizing --------------------------------------
    # Resident weights/biases (double-buffered by the pipeline even though the
    # constant block index means the 2nd buffer is never re-filled):
    resident = 2 * ((d_in * f1p + f1p * f2p + f2p * na) * w_bytes
                    + (f1p + f2p + na) * 4)
    # Per batch-row VMEM: the (tb, d_in) and (tb, na) tiles are lane-padded to a
    # multiple of 128 in VMEM (a (tb, 8) f32 tile really costs tb*512 B per buffer),
    # each double-buffered, plus f32 h1/h2 temporaries and their casts.
    per_row = (2 * _round_up(d_in, LANE) * s_bytes
               + 2 * _round_up(na, LANE) * 4
               + 2 * (f1p + f2p) * 4)
    cap = max((VMEM_TILE_BUDGET - resident) // per_row, sub)

    b_min = _round_up(B, sub)
    tb = min(block_b, MAX_TB, cap, b_min)
    tb = max(_round_down(tb, sub), sub)
    # v7x has two TensorCores: ensure the "parallel" batch axis has >= 2 programs
    # whenever the batch can be split (no effect, and no harm, on v5e/v6e).
    if tb == b_min and b_min >= 2 * sub:
        tb = _round_up(pl.cdiv(b_min, 2), sub)
    b_pad = _round_up(b_min, tb)

    if b_pad != B:
        # Padded rows compute tanh(...(b3)) != 0 but are sliced off below (out[:B]).
        state = jnp.pad(state, ((0, b_pad - B), (0, 0)))
    grid = (b_pad // tb,)

    # Weights/biases: full-extent blocks with a constant block index -> DMA'd into
    # VMEM once and kept resident across all batch tiles (no per-step re-fetch).
    resident_spec = lambda a: pl.BlockSpec(a.shape, lambda i: (0, 0))

    cost = pl.CostEstimate(
        flops=int(2 * b_pad * (d_in * f1p + f1p * f2p + f2p * na)),
        transcendentals=int(b_pad * na),
        bytes_accessed=int(b_pad * d_in * s_bytes
                           + (d_in * f1p + f1p * f2p + f2p * na) * w_bytes
                           + (f1p + f2p + na) * 4
                           + b_pad * na * 4),
    )

    out = pl.pallas_call(
        actor_forward_kernel,
        out_shape=jax.ShapeDtypeStruct((b_pad, na), jnp.float32),
        grid_spec=pltpu.PrefetchScalarGridSpec(
            num_scalar_prefetch=0,
            grid=grid,
            in_specs=[
                pl.BlockSpec((tb, d_in), lambda i: (i, 0)),
                resident_spec(w1), resident_spec(b1),
                resident_spec(w2), resident_spec(b2),
                resident_spec(w3), resident_spec(b3),
            ],
            # Output block spans the full n_actions last dim (legal: equals the array
            # dim), so the HBM write is only n_actions*4 bytes/row instead of 512.
            out_specs=pl.BlockSpec((tb, na), lambda i: (i, 0)),
        ),
        compiler_params=pltpu.CompilerParams(
            dimension_semantics=("parallel",),          # shard batch tiles across TCs (v7x)
            vmem_limit_bytes=VMEM_LIMIT_BYTES,
        ),
        cost_estimate=cost,
    )(state, w1, b1, w2, b2, w3, b3)

    return out[:B]   # drop padded batch rows only (columns are already exact)


if __name__ == "__main__":
    key = jax.random.PRNGKey(0)
    k_in, k1, k2, k3 = jax.random.split(key, 4)

    # Small shapes consistent with the module's constructor:
    # input_dims=(8,), fc1_dims=32, fc2_dims=32, n_actions=4, batch=2
    B, D_in, fc1_dims, fc2_dims, n_actions = 2, 8, 32, 32, 4

    state = jax.random.normal(k_in, (B, D_in), jnp.float32)
    w1, b1 = init_linear(k1, D_in, fc1_dims)
    w2, b2 = init_linear(k2, fc1_dims, fc2_dims)
    w3, b3 = init_linear(k3, fc2_dims, n_actions)

    # Pure-JAX reference (same math as the PyTorch forward).
    def ref_forward(s):
        h1 = jnp.maximum(s @ w1 + b1, 0.0)
        h2 = jnp.maximum(h1 @ w2 + b2, 0.0)
        return jnp.tanh(h2 @ w3 + b3)

    params_f32 = pad_actor_params(w1, b1, w2, b2, w3, b3, param_dtype=jnp.float32)

    # --- f32, tiny batch (grid=(1,), matches the module's default usage) ---
    mu = jax.block_until_ready(actor_forward(state, *params_f32))
    assert mu.shape == (B, n_actions)
    assert jnp.allclose(mu, ref_forward(state), atol=1e-5, rtol=1e-5)

    # --- f32, multi-tile grid (small block_b forces 3 batch tiles) ---
    B_big = 300
    state_big = jax.random.normal(k_in, (B_big, D_in), jnp.float32)
    ref_big = ref_forward(state_big)
    mu_big = jax.block_until_ready(actor_forward(state_big, *params_f32, block_b=128))
    assert mu_big.shape == (B_big, n_actions)
    assert jnp.allclose(mu_big, ref_big, atol=1e-5, rtol=1e-5)

    # --- f32, default block_b: whole batch fits one tile -> auto-split into 2
    #     programs so both v7x TensorCores get work ---
    mu_split = jax.block_until_ready(actor_forward(state_big, *params_f32))
    assert mu_split.shape == (B_big, n_actions)
    assert jnp.allclose(mu_split, ref_big, atol=1e-5, rtol=1e-5)

    # --- bf16 weights/state (recommended for large replay-buffer batches on
    #     v6e/v7x: 2x MXU throughput, half the HBM/VMEM weight bytes; f32 accumulate) ---
    params_bf16 = pad_actor_params(w1, b1, w2, b2, w3, b3, param_dtype=jnp.bfloat16)
    mu_bf16 = jax.block_until_ready(
        actor_forward(state_big.astype(jnp.bfloat16), *params_bf16))
    assert mu_bf16.shape == (B_big, n_actions)
    assert jnp.allclose(mu_bf16, ref_big, atol=5e-2, rtol=5e-2)

    # TODO(synk): Adam optimizer and checkpoint save/load from the PyTorch module are
    # training/IO-side state and are intentionally not part of this forward kernel.
    print("KERNEL_OK")
</pallas_src>

<mosaic_0001>
module attributes {stable_mosaic.version = 11 : i64} {
  func.func @actor_forward_kernel(%arg0: i32, %arg1: memref<8x8xf32, #tpu.memory_space<vmem>>, %arg2: memref<8x128xf32, #tpu.memory_space<vmem>>, %arg3: memref<1x128xf32, #tpu.memory_space<vmem>>, %arg4: memref<128x128xf32, #tpu.memory_space<vmem>>, %arg5: memref<1x128xf32, #tpu.memory_space<vmem>>, %arg6: memref<128x4xf32, #tpu.memory_space<vmem>>, %arg7: memref<1x4xf32, #tpu.memory_space<vmem>>, %arg8: memref<8x4xf32, #tpu.memory_space<vmem>>) attributes {dimension_semantics = [#tpu.dimension_semantics<parallel>], iteration_bounds = array<i64: 1>, scalar_prefetch = 0 : i64, scratch_operands = 0 : i64, tpu.core_type = #tpu.core_type<tc>, window_params = [{transform_indices = @transform_0, window_bounds = array<i64: 8, 8>}, {pipeline_mode = #tpu.pipeline_mode<synchronous>, transform_indices = @transform_1, window_bounds = array<i64: 8, 128>}, {pipeline_mode = #tpu.pipeline_mode<synchronous>, transform_indices = @transform_2, window_bounds = array<i64: 1, 128>}, {pipeline_mode = #tpu.pipeline_mode<synchronous>, transform_indices = @transform_3, window_bounds = array<i64: 128, 128>}, {pipeline_mode = #tpu.pipeline_mode<synchronous>, transform_indices = @transform_4, window_bounds = array<i64: 1, 128>}, {pipeline_mode = #tpu.pipeline_mode<synchronous>, transform_indices = @transform_5, window_bounds = array<i64: 128, 4>}, {pipeline_mode = #tpu.pipeline_mode<synchronous>, transform_indices = @transform_6, window_bounds = array<i64: 1, 4>}, {transform_indices = @transform_7, window_bounds = array<i64: 8, 4>}]} {
    %c0 = arith.constant 0 : index
    %c0_0 = arith.constant 0 : index
    %0 = vector.load %arg1[%c0, %c0_0] : memref<8x8xf32, #tpu.memory_space<vmem>>, vector<8x8xf32>
    %c0_1 = arith.constant 0 : index
    %c0_2 = arith.constant 0 : index
    %1 = vector.load %arg2[%c0_1, %c0_2] : memref<8x128xf32, #tpu.memory_space<vmem>>, vector<8x128xf32>
    %cst = arith.constant dense<0.000000e+00> : vector<8x128xf32>
    %2 = tpu.matmul %0, %1, %cst {dimension_numbers = #tpu.dot_dimension_numbers<[1], [0], [0], [1], [0, 0, 1, 1], [], []>} : vector<8x8xf32>, vector<8x128xf32>, vector<8x128xf32> -> vector<8x128xf32>
    %c0_3 = arith.constant 0 : index
    %c0_4 = arith.constant 0 : index
    %3 = vector.load %arg3[%c0_3, %c0_4] : memref<1x128xf32, #tpu.memory_space<vmem>>, vector<1x128xf32>
    %4 = vector.broadcast %3 : vector<1x128xf32> to vector<8x128xf32>
    %5 = arith.addf %2, %4 : vector<8x128xf32>
    %cst_5 = arith.constant 0.000000e+00 : f32
    %6 = vector.broadcast %cst_5 : f32 to vector<8x128xf32>
    %7 = arith.maximumf %5, %6 : vector<8x128xf32>
    %c0_6 = arith.constant 0 : index
    %c0_7 = arith.constant 0 : index
    %8 = vector.load %arg4[%c0_6, %c0_7] : memref<128x128xf32, #tpu.memory_space<vmem>>, vector<128x128xf32>
    %cst_8 = arith.constant dense<0.000000e+00> : vector<8x128xf32>
    %9 = tpu.matmul %7, %8, %cst_8 {dimension_numbers = #tpu.dot_dimension_numbers<[1], [0], [0], [1], [0, 0, 1, 1], [], []>} : vector<8x128xf32>, vector<128x128xf32>, vector<8x128xf32> -> vector<8x128xf32>
    %c0_9 = arith.constant 0 : index
    %c0_10 = arith.constant 0 : index
    %10 = vector.load %arg5[%c0_9, %c0_10] : memref<1x128xf32, #tpu.memory_space<vmem>>, vector<1x128xf32>
    %11 = vector.broadcast %10 : vector<1x128xf32> to vector<8x128xf32>
    %12 = arith.addf %9, %11 : vector<8x128xf32>
    %cst_11 = arith.constant 0.000000e+00 : f32
    %13 = vector.broadcast %cst_11 : f32 to vector<8x128xf32>
    %14 = arith.maximumf %12, %13 : vector<8x128xf32>
    %c0_12 = arith.constant 0 : index
    %c0_13 = arith.constant 0 : index
    %15 = vector.load %arg6[%c0_12, %c0_13] : memref<128x4xf32, #tpu.memory_space<vmem>>, vector<128x4xf32>
    %cst_14 = arith.constant dense<0.000000e+00> : vector<8x4xf32>
    %16 = tpu.matmul %14, %15, %cst_14 {dimension_numbers = #tpu.dot_dimension_numbers<[1], [0], [0], [1], [0, 0, 1, 1], [], []>} : vector<8x128xf32>, vector<128x4xf32>, vector<8x4xf32> -> vector<8x4xf32>
    %c0_15 = arith.constant 0 : index
    %c0_16 = arith.constant 0 : index
    %17 = vector.load %arg7[%c0_15, %c0_16] : memref<1x4xf32, #tpu.memory_space<vmem>>, vector<1x4xf32>
    %18 = vector.broadcast %17 : vector<1x4xf32> to vector<8x4xf32>
    %19 = arith.addf %16, %18 : vector<8x4xf32>
    %20 = math.tanh %19 : vector<8x4xf32>
    %c0_17 = arith.constant 0 : index
    %c0_18 = arith.constant 0 : index
    %21 = vector.load %arg8[%c0_17, %c0_18] : memref<8x4xf32, #tpu.memory_space<vmem>>, vector<8x4xf32>
    tpu.vector_store %arg8[%c0_17, %c0_18], %20 {strides = array<i32>} : memref<8x4xf32, #tpu.memory_space<vmem>>, vector<8x4xf32>,
    return
  }
  func.func @transform_0(%arg0: i32) -> (i32, i32) {
    %c0_i32 = arith.constant 0 : i32
    %c0_i32_0 = arith.constant 0 : i32
    return %arg0, %c0_i32 : i32, i32
  }
  func.func @transform_1(%arg0: i32) -> (i32, i32) {
    %c0_i32 = arith.constant 0 : i32
    %c0_i32_0 = arith.constant 0 : i32
    %c0_i32_1 = arith.constant 0 : i32
    return %c0_i32, %c0_i32_0 : i32, i32
  }
  func.func @transform_2(%arg0: i32) -> (i32, i32) {
    %c0_i32 = arith.constant 0 : i32
    %c0_i32_0 = arith.constant 0 : i32
    %c0_i32_1 = arith.constant 0 : i32
    return %c0_i32, %c0_i32_0 : i32, i32
  }
  func.func @transform_3(%arg0: i32) -> (i32, i32) {
    %c0_i32 = arith.constant 0 : i32
    %c0_i32_0 = arith.constant 0 : i32
    %c0_i32_1 = arith.constant 0 : i32
    return %c0_i32, %c0_i32_0 : i32, i32
  }
  func.func @transform_4(%arg0: i32) -> (i32, i32) {
    %c0_i32 = arith.constant 0 : i32
    %c0_i32_0 = arith.constant 0 : i32
    %c0_i32_1 = arith.constant 0 : i32
    return %c0_i32, %c0_i32_0 : i32, i32
  }
  func.func @transform_5(%arg0: i32) -> (i32, i32) {
    %c0_i32 = arith.constant 0 : i32
    %c0_i32_0 = arith.constant 0 : i32
    %c0_i32_1 = arith.constant 0 : i32
    return %c0_i32, %c0_i32_0 : i32, i32
  }
  func.func @transform_6(%arg0: i32) -> (i32, i32) {
    %c0_i32 = arith.constant 0 : i32
    %c0_i32_0 = arith.constant 0 : i32
    %c0_i32_1 = arith.constant 0 : i32
    return %c0_i32, %c0_i32_0 : i32, i32
  }
  func.func @transform_7(%arg0: i32) -> (i32, i32) {
    %c0_i32 = arith.constant 0 : i32
    %c0_i32_0 = arith.constant 0 : i32
    return %arg0, %c0_i32 : i32, i32
  }
}

</mosaic_0001>

<llo_original>
// kernel: actor_forward.1
$region0: #{actor_forward.1}
  #allocation0 [shape = 'u32[]', space=smem, size = 0x4, offset = 0x4, fixed_abs, tag = 'smem constant byte address 0x4 - core index']
  #allocation1 [shape = 'u32[144,128]{1,0:T(1,128)}', space=vmem, size = 0x12000, scoped, tag = 'internal scratch']
  %s0 = inlined_call_operand.vmem [shape: f32[8,8], index: 0, kind: input, shape index: {}]
  %s1 = inlined_call_operand.vmem [shape: f32[8,128], index: 1, kind: input, shape index: {}]
  %s2 = inlined_call_operand.vmem [shape: f32[1,128], index: 2, kind: input, shape index: {}]
  %s3 = inlined_call_operand.vmem [shape: f32[128,128], index: 3, kind: input, shape index: {}]
  %s4 = inlined_call_operand.vmem [shape: f32[1,128], index: 4, kind: input, shape index: {}]
  %s5 = inlined_call_operand.vmem [shape: f32[128,4], index: 5, kind: input, shape index: {}]
  %s6 = inlined_call_operand.vmem [shape: f32[1,4], index: 6, kind: input, shape index: {}]
  %s7 = inlined_call_operand.vmem [shape: f32[8,4], index: 7, kind: output, shape index: {}]
  %s8 = sld [smem:[#allocation0]]
  $region38: #{actor_forward.1} parent=0
    _
  %s10 = ssub.s32 1, %s8
  %s11 = scalar_select 0, %s10, %s8
  // Predicated region
  $region2: #{actor_forward.1} parent=0 // pred_check
    _
  $region3: #{actor_forward.1} parent=0 // pred_check_branch
    %13 = sbr.rel (0) target = $region5
  $region4: #{actor_forward.1} parent=0 // pred_region
    _
  $region5: #{actor_forward.1} parent=0 // pred_fallthru
    _
  // Predicated region
  $region6: #{actor_forward.1} parent=0 // pred_check
    _
  $region7: #{actor_forward.1} parent=0 // pred_check_branch
    %15 = sbr.rel (0) target = $region9
  $region8: #{actor_forward.1} parent=0 // pred_region
    _
  $region9: #{actor_forward.1} parent=0 // pred_fallthru
    _
  // Predicated region
  $region10: #{actor_forward.1} parent=0 // pred_check
    _
  $region11: #{actor_forward.1} parent=0 // pred_check_branch
    %17 = sbr.rel (0) target = $region13
  $region12: #{actor_forward.1} parent=0 // pred_region
    _
  $region13: #{actor_forward.1} parent=0 // pred_fallthru
    _
  // Predicated region
  $region14: #{actor_forward.1} parent=0 // pred_check
    _
  $region15: #{actor_forward.1} parent=0 // pred_check_branch
    %19 = sbr.rel (0) target = $region17
  $region16: #{actor_forward.1} parent=0 // pred_region
    _
  $region17: #{actor_forward.1} parent=0 // pred_fallthru
    _
  // Predicated region
  $region18: #{actor_forward.1} parent=0 // pred_check
    _
  $region19: #{actor_forward.1} parent=0 // pred_check_branch
    %21 = sbr.rel (0) target = $region21
  $region20: #{actor_forward.1} parent=0 // pred_region
    _
  $region21: #{actor_forward.1} parent=0 // pred_fallthru
    _
  // Predicated region
  $region22: #{actor_forward.1} parent=0 // pred_check
    _
  $region23: #{actor_forward.1} parent=0 // pred_check_branch
    %23 = sbr.rel (0) target = $region25
  $region24: #{actor_forward.1} parent=0 // pred_region
    _
  $region25: #{actor_forward.1} parent=0 // pred_fallthru
    _
  // Predicated region
  $region26: #{actor_forward.1} parent=0 // pred_check
    _
  $region27: #{actor_forward.1} parent=0 // pred_check_branch
    %25 = sbr.rel (0) target = $region29
  $region28: #{actor_forward.1} parent=0 // pred_region
    _
  $region29: #{actor_forward.1} parent=0 // pred_fallthru
    _
  %v26 = vld [vmem:[%s0] sm:$0xff]
  %v27 = vld [vmem:[%s1] sm:$0xff]
  %v28 = vld [vmem:[%s2] sm:$0x1]
  %v30 = vlaneseq
  %v31 = vshrl.u32 %v30, 7
  %v32 = vsub.s32 0, %v31
  %v33 = vrot.slane %v28, %v32
  %vm35 = vcmask 64512
  %v37 = vsel %vm35, %v26, 0
  %39 = vmatprep.subr.mxu0 0.0
  %40 = vmatpush1.msra.mxu0 %v27
  %41 = vmatprep.subr.mxu0 0.0
  %42 = vmatpush1.msra.mxu0 0.0
  %43 = vmatprep.subr.mxu0 0.0
  %44 = vmatpush1.msra.mxu0 0.0
  %45 = vmatprep.subr.mxu0 0.0
  %46 = vmatpush1.msra.mxu0 0.0
  %47 = vmatprep.subr.mxu0 0.0
  %48 = vmatpush1.msra.mxu0 0.0
  %49 = vmatprep.subr.mxu0 0.0
  %50 = vmatpush1.msra.mxu0 0.0
  %51 = vmatprep.subr.mxu0 0.0
  %52 = vmatpush1.msra.mxu0 0.0
  %53 = vmatprep.subr.mxu0 0.0
  %54 = vmatpush1.msra.mxu0 0.0
  %55 = vmatprep.subr.mxu0 0.0
  %56 = vmatpush1.msra.mxu0 0.0
  %57 = vmatprep.subr.mxu0 0.0
  %58 = vmatpush1.msra.mxu0 0.0
  %59 = vmatprep.subr.mxu0 0.0
  %60 = vmatpush1.msra.mxu0 0.0
  %61 = vmatprep.subr.mxu0 0.0
  %62 = vmatpush1.msra.mxu0 0.0
  %63 = vmatprep.subr.mxu0 0.0
  %64 = vmatpush1.msra.mxu0 0.0
  %65 = vmatprep.subr.mxu0 0.0
  %66 = vmatpush1.msra.mxu0 0.0
  %67 = vmatprep.subr.mxu0 0.0
  %68 = vmatpush1.msra.mxu0 0.0
  %69 = vmatprep.subr.mxu0 0.0
  %70 = vmatpush1.msra.mxu0 0.0
  %71 = vmatprep.subr.mxu0 0.0
  %72 = vmatpush1.msra.mxu0 0.0
  %73 = vmatprep.subr.mxu0 0.0
  %74 = vmatpush1.msra.mxu0 0.0
  %75 = vmatprep.subr.mxu0 0.0
  %76 = vmatpush1.msra.mxu0 0.0
  %77 = vmatprep.subr.mxu0 0.0
  %78 = vmatpush1.msra.mxu0 0.0
  %79 = vmatprep.subr.mxu0 0.0
  %80 = vmatpush1.msra.mxu0 0.0
  %81 = vmatprep.subr.mxu0 0.0
  %82 = vmatpush1.msra.mxu0 0.0
  %83 = vmatprep.subr.mxu0 0.0
  %84 = vmatpush1.msra.mxu0 0.0
  %85 = vmatprep.subr.mxu0 0.0
  %86 = vmatpush1.msra.mxu0 0.0
  %87 = vmatprep.subr.mxu0 0.0
  %88 = vmatpush1.msra.mxu0 0.0
  %89 = vmatprep.subr.mxu0 0.0
  %90 = vmatpush1.msra.mxu0 0.0
  %91 = vmatprep.subr.mxu0 0.0
  %92 = vmatpush1.msra.mxu0 0.0
  %93 = vmatprep.subr.mxu0 0.0
  %94 = vmatpush1.msra.mxu0 0.0
  %95 = vmatprep.subr.mxu0 0.0
  %96 = vmatpush1.msra.mxu0 0.0
  %97 = vmatprep.subr.mxu0 0.0
  %98 = vmatpush1.msra.mxu0 0.0
  %99 = vmatprep.subr.mxu0 0.0
  %100 = vmatpush1.msra.mxu0 0.0
  %101 = vmatprep.subr.mxu0 0.0
  %102 = vmatpush1.msra.mxu0 0.0
  %103 = vmatprep.mubr.f32.mxu0 0.0
  %104 = vmatmul.mubr.f32.gmra.mrb[0].mxu0 %v37
  %v105 = vpop.f32.mrb[0].mxu0
  %v106 = vadd.f32 %v33, %v105
  %v107 = vpop.f32.mrb[0].mxu0
  %108 = vdwg.mxu0
  %v109 = vmax.f32 %v106, 0.0
  %v110 = vld [vmem:[%s3] sm:$0xff]
  %v111 = vld [vmem:[%s3 + $0x8] sm:$0xff]
  %v112 = vld [vmem:[%s3 + $0x10] sm:$0xff]
  %v113 = vld [vmem:[%s3 + $0x18] sm:$0xff]
  %v114 = vld [vmem:[%s3 + $0x20] sm:$0xff]
  %v115 = vld [vmem:[%s3 + $0x28] sm:$0xff]
  %v116 = vld [vmem:[%s3 + $0x30] sm:$0xff]
  %v117 = vld [vmem:[%s3 + $0x38] sm:$0xff]
  %v118 = vld [vmem:[%s3 + $0x40] sm:$0xff]
  %v119 = vld [vmem:[%s3 + $0x48] sm:$0xff]
  %v120 = vld [vmem:[%s3 + $0x50] sm:$0xff]
  %v121 = vld [vmem:[%s3 + $0x58] sm:$0xff]
  %v122 = vld [vmem:[%s3 + $0x60] sm:$0xff]
  %v123 = vld [vmem:[%s3 + $0x68] sm:$0xff]
  %v124 = vld [vmem:[%s3 + $0x70] sm:$0xff]
  %v125 = vld [vmem:[%s3 + $0x78] sm:$0xff]
  %v126 = vld [vmem:[%s4] sm:$0x1]
  %v128 = vlaneseq
  %v129 = vshrl.u32 %v128, 7
  %v130 = vsub.s32 0, %v129
  %v131 = vrot.slane %v126, %v130
  %133 = vmatprep.subr.mxu0 0.0
  %134 = vmatpush1.msra.mxu0 %v110
  %135 = vmatprep.subr.mxu0 0.0
  %136 = vmatpush1.msra.mxu0 %v111
  %137 = vmatprep.subr.mxu0 0.0
  %138 = vmatpush1.msra.mxu0 %v112
  %139 = vmatprep.subr.mxu0 0.0
  %140 = vmatpush1.msra.mxu0 %v113
  %141 = vmatprep.subr.mxu0 0.0
  %142 = vmatpush1.msra.mxu0 %v114
  %143 = vmatprep.subr.mxu0 0.0
  %144 = vmatpush1.msra.mxu0 %v115
  %145 = vmatprep.subr.mxu0 0.0
  %146 = vmatpush1.msra.mxu0 %v116
  %147 = vmatprep.subr.mxu0 0.0
  %148 = vmatpush1.msra.mxu0 %v117
  %149 = vmatprep.subr.mxu0 0.0
  %150 = vmatpush1.msra.mxu0 %v118
  %151 = vmatprep.subr.mxu0 0.0
  %152 = vmatpush1.msra.mxu0 %v119
  %153 = vmatprep.subr.mxu0 0.0
  %154 = vmatpush1.msra.mxu0 %v120
  %155 = vmatprep.subr.mxu0 0.0
  %156 = vmatpush1.msra.mxu0 %v121
  %157 = vmatprep.subr.mxu0 0.0
  %158 = vmatpush1.msra.mxu0 %v122
  %159 = vmatprep.subr.mxu0 0.0
  %160 = vmatpush1.msra.mxu0 %v123
  %161 = vmatprep.subr.mxu0 0.0
  %162 = vmatpush1.msra.mxu0 %v124
  %163 = vmatprep.subr.mxu0 0.0
  %164 = vmatpush1.msra.mxu0 %v125
  %165 = vmatprep.subr.mxu0 0.0
  %166 = vmatpush1.msra.mxu0 0.0
  %167 = vmatprep.subr.mxu0 0.0
  %168 = vmatpush1.msra.mxu0 0.0
  %169 = vmatprep.subr.mxu0 0.0
  %170 = vmatpush1.msra.mxu0 0.0
  %171 = vmatprep.subr.mxu0 0.0
  %172 = vmatpush1.msra.mxu0 0.0
  %173 = vmatprep.subr.mxu0 0.0
  %174 = vmatpush1.msra.mxu0 0.0
  %175 = vmatprep.subr.mxu0 0.0
  %176 = vmatpush1.msra.mxu0 0.0
  %177 = vmatprep.subr.mxu0 0.0
  %178 = vmatpush1.msra.mxu0 0.0
  %179 = vmatprep.subr.mxu0 0.0
  %180 = vmatpush1.msra.mxu0 0.0
  %181 = vmatprep.subr.mxu0 0.0
  %182 = vmatpush1.msra.mxu0 0.0
  %183 = vmatprep.subr.mxu0 0.0
  %184 = vmatpush1.msra.mxu0 0.0
  %185 = vmatprep.subr.mxu0 0.0
  %186 = vmatpush1.msra.mxu0 0.0
  %187 = vmatprep.subr.mxu0 0.0
  %188 = vmatpush1.msra.mxu0 0.0
  %189 = vmatprep.subr.mxu0 0.0
  %190 = vmatpush1.msra.mxu0 0.0
  %191 = vmatprep.subr.mxu0 0.0
  %192 = vmatpush1.msra.mxu0 0.0
  %193 = vmatprep.subr.mxu0 0.0
  %194 = vmatpush1.msra.mxu0 0.0
  %195 = vmatprep.subr.mxu0 0.0
  %196 = vmatpush1.msra.mxu0 0.0
  %197 = vmatprep.mubr.f32.mxu0 0.0
  %198 = vmatmul.mubr.f32.gmra.mrb[0].mxu0 %v109
  %v199 = vpop.f32.mrb[0].mxu0
  %v200 = vadd.f32 %v131, %v199
  %v201 = vpop.f32.mrb[0].mxu0
  %202 = vdwg.mxu0
  %v203 = vmax.f32 %v200, 0.0
  %v204 = vld [vmem:[%s5] sm:$0xff]
  %v205 = vld [vmem:[%s5 + $0x8] sm:$0xff]
  %v206 = vld [vmem:[%s5 + $0x10] sm:$0xff]
  %v207 = vld [vmem:[%s5 + $0x18] sm:$0xff]
  %v208 = vld [vmem:[%s5 + $0x20] sm:$0xff]
  %v209 = vld [vmem:[%s5 + $0x28] sm:$0xff]
  %v210 = vld [vmem:[%s5 + $0x30] sm:$0xff]
  %v211 = vld [vmem:[%s5 + $0x38] sm:$0xff]
  %v212 = vld [vmem:[%s5 + $0x40] sm:$0xff]
  %v213 = vld [vmem:[%s5 + $0x48] sm:$0xff]
  %v214 = vld [vmem:[%s5 + $0x50] sm:$0xff]
  %v215 = vld [vmem:[%s5 + $0x58] sm:$0xff]
  %v216 = vld [vmem:[%s5 + $0x60] sm:$0xff]
  %v217 = vld [vmem:[%s5 + $0x68] sm:$0xff]
  %v218 = vld [vmem:[%s5 + $0x70] sm:$0xff]
  %v219 = vld [vmem:[%s5 + $0x78] sm:$0xff]
  %v220 = vld [vmem:[%s6] sm:$0x1]
  %v222 = vlaneseq
  %v223 = vshrl.u32 %v222, 7
  %v224 = vsub.s32 0, %v223
  %v225 = vrot.slane %v220, %v224
  %227 = vmatprep.subr.mxu0 0.0
  %228 = vmatpush1.msra.mxu0 %v204
  %229 = vmatprep.subr.mxu0 0.0
  %230 = vmatpush1.msra.mxu0 %v205
  %231 = vmatprep.subr.mxu0 0.0
  %232 = vmatpush1.msra.mxu0 %v206
  %233 = vmatprep.subr.mxu0 0.0
  %234 = vmatpush1.msra.mxu0 %v207
  %235 = vmatprep.subr.mxu0 0.0
  %236 = vmatpush1.msra.mxu0 %v208
  %237 = vmatprep.subr.mxu0 0.0
  %238 = vmatpush1.msra.mxu0 %v209
  %239 = vmatprep.subr.mxu0 0.0
  %240 = vmatpush1.msra.mxu0 %v210
  %241 = vmatprep.subr.mxu0 0.0
  %242 = vmatpush1.msra.mxu0 %v211
  %243 = vmatprep.subr.mxu0 0.0
  %244 = vmatpush1.msra.mxu0 %v212
  %245 = vmatprep.subr.mxu0 0.0
  %246 = vmatpush1.msra.mxu0 %v213
  %247 = vmatprep.subr.mxu0 0.0
  %248 = vmatpush1.msra.mxu0 %v214
  %249 = vmatprep.subr.mxu0 0.0
  %250 = vmatpush1.msra.mxu0 %v215
  %251 = vmatprep.subr.mxu0 0.0
  %252 = vmatpush1.msra.mxu0 %v216
  %253 = vmatprep.subr.mxu0 0.0
  %254 = vmatpush1.msra.mxu0 %v217
  %255 = vmatprep.subr.mxu0 0.0
  %256 = vmatpush1.msra.mxu0 %v218
  %257 = vmatprep.subr.mxu0 0.0
  %258 = vmatpush1.msra.mxu0 %v219
  %259 = vmatprep.subr.mxu0 0.0
  %260 = vmatpush1.msra.mxu0 0.0
  %261 = vmatprep.subr.mxu0 0.0
  %262 = vmatpush1.msra.mxu0 0.0
  %263 = vmatprep.subr.mxu0 0.0
  %264 = vmatpush1.msra.mxu0 0.0
  %265 = vmatprep.subr.mxu0 0.0
  %266 = vmatpush1.msra.mxu0 0.0
  %267 = vmatprep.subr.mxu0 0.0
  %268 = vmatpush1.msra.mxu0 0.0
  %269 = vmatprep.subr.mxu0 0.0
  %270 = vmatpush1.msra.mxu0 0.0
  %271 = vmatprep.subr.mxu0 0.0
  %272 = vmatpush1.msra.mxu0 0.0
  %273 = vmatprep.subr.mxu0 0.0
  %274 = vmatpush1.msra.mxu0 0.0
  %275 = vmatprep.subr.mxu0 0.0
  %276 = vmatpush1.msra.mxu0 0.0
  %277 = vmatprep.subr.mxu0 0.0
  %278 = vmatpush1.msra.mxu0 0.0
  %279 = vmatprep.subr.mxu0 0.0
  %280 = vmatpush1.msra.mxu0 0.0
  %281 = vmatprep.subr.mxu0 0.0
  %282 = vmatpush1.msra.mxu0 0.0
  %283 = vmatprep.subr.mxu0 0.0
  %284 = vmatpush1.msra.mxu0 0.0
  %285 = vmatprep.subr.mxu0 0.0
  %286 = vmatpush1.msra.mxu0 0.0
  %287 = vmatprep.subr.mxu0 0.0
  %288 = vmatpush1.msra.mxu0 0.0
  %289 = vmatprep.subr.mxu0 0.0
  %290 = vmatpush1.msra.mxu0 0.0
  %291 = vmatprep.mubr.f32.mxu0 0.0
  %292 = vmatmul.mubr.f32.gmra.mrb[0].mxu0 %v203
  %v293 = vpop.f32.mrb[0].mxu0
  %v294 = vadd.f32 %v225, %v293
  %v295 = vpop.f32.mrb[0].mxu0
  %296 = vdwg.mxu0
  %v297 = vtanh.pop %v294
  %vm298 = vcmask 31744
  %299 = vst.msk [vmem:[%s7] sm:$0xff] %vm298, %v297
  // Predicated region
  $region30: #{actor_forward.1} parent=0 // pred_check
    _
  $region31: #{actor_forward.1} parent=0 // pred_check_branch
    %301 = sbr.rel (0) target = $region33
  $region32: #{actor_forward.1} parent=0 // pred_region
    _
  $region33: #{actor_forward.1} parent=0 // pred_fallthru
    _
  // Predicated region
  $region34: #{actor_forward.1} parent=0 // pred_check
    _
  $region35: #{actor_forward.1} parent=0 // pred_check_branch
    %303 = sbr.rel (0) target = $region37
  $region36: #{actor_forward.1} parent=0 // pred_region
    _
  $region37: #{actor_forward.1} parent=0 // pred_fallthru
    _

</llo_original>
